<compile_context>
chip_gen: v5e
topology: v5e:2x2
jax: 0.10.0
libtpu: 0.0.40
codegen_flags: <defaults>
</compile_context>

<pallas_src>
import functools

import jax
import jax.numpy as jnp
from jax.experimental import pallas as pl
from jax.experimental.pallas import tpu as pltpu


def _round_up(x, m):
    return ((x + m - 1) // m) * m


def _fused_kernel(hidden_dim, counts_ref, weff_ref, bgates_ref, wfc_ref,
                  bfc_ref, out_ref, acc_ref):
    """One (batch-tile, vocab-tile) grid step.

    counts_ref : (tb, tv)  bf16  per-bag token counts (vocab slice)
    weff_ref   : (tv, 4H)  bf16  fused  emb @ W_ih^T  (vocab slice)
    bgates_ref : (1, 4H)   f32   b_ih + b_hh
    wfc_ref    : (1, H)    f32   fc weight row
    bfc_ref    : (1,)      f32   fc bias (SMEM scalar)
    out_ref    : (tb, 1)   f32   sigmoid output
    acc_ref    : (tb, 4H)  f32   VMEM gate accumulator over vocab tiles
    """
    H = hidden_dim
    k = pl.program_id(1)

    @pl.when(k == 0)
    def _init():
        acc_ref[...] = jnp.zeros_like(acc_ref)

    # Partial gate pre-activations for this vocab slice: single MXU matmul,
    # bf16 in / f32 accumulate.  N = 4H is lane-dense (multiple of 128 for
    # realistic H; equal to 128 in the toy example).
    acc_ref[...] += jnp.dot(counts_ref[...], weff_ref[...],
                            preferred_element_type=jnp.float32)

    @pl.when(k == pl.num_programs(1) - 1)
    def _finalize():
        # PyTorch LSTM gate order along the 4H axis: [i, f, g, o].
        gates = acc_ref[...] + bgates_ref[...]
        i = jax.nn.sigmoid(gates[:, 0 * H:1 * H])
        g = jnp.tanh(gates[:, 2 * H:3 * H])
        o = jax.nn.sigmoid(gates[:, 3 * H:4 * H])
        c = i * g                    # f * c0 == 0 because c0 == 0
        h = o * jnp.tanh(c)          # == hidden.squeeze(0) in the reference
        # Linear(H -> 1) + Sigmoid as a lane reduction (VPU/XLU), avoiding a
        # 1-lane MXU matmul and keeping the MXU free.
        logits = jnp.sum(h * wfc_ref[...], axis=-1, keepdims=True) + bfc_ref[0]
        out_ref[...] = jax.nn.sigmoid(logits)


def init_params(key, vocab_size, embed_dim, hidden_dim):
    """Deterministic init matching PyTorchNetwork.__init__ / init_weights."""
    initrange = 0.5
    k1, k2, k3, k4 = jax.random.split(key, 4)
    emb = jax.random.uniform(k1, (vocab_size, embed_dim), jnp.float32,
                             -initrange, initrange)
    # init_weights() does NOT re-init weight_ih_l0 -> keep default LSTM init.
    stdv = 1.0 / (hidden_dim ** 0.5)
    w_ih = jax.random.uniform(k2, (4 * hidden_dim, embed_dim), jnp.float32,
                              -stdv, stdv)
    # weight_hh_l0 ~ U(-0.5, 0.5); never affects the output since h0 == 0.
    w_hh = jax.random.uniform(k3, (4 * hidden_dim, hidden_dim), jnp.float32,
                              -initrange, initrange)
    b_ih = jnp.zeros((4 * hidden_dim,), jnp.float32)
    b_hh = jnp.zeros((4 * hidden_dim,), jnp.float32)
    w_fc = jax.random.uniform(k4, (1, hidden_dim), jnp.float32,
                              -initrange, initrange)
    b_fc = jnp.zeros((1,), jnp.float32)
    return dict(embedding=emb, w_ih=w_ih, w_hh=w_hh, b_ih=b_ih, b_hh=b_hh,
                w_fc=w_fc, b_fc=b_fc)


def pytorch_network_forward(text, offsets, params, vocab_size,
                            *, b_tile=256, v_tile=512):
    """Equivalent of PyTorchNetwork.forward(text, offsets) -> (B,) float32."""
    B = offsets.shape[0]
    T = text.shape[0]
    V = vocab_size
    H = params["w_fc"].shape[1]

    # ---- plain-JAX glue ----------------------------------------------------
    # Fuse EmbeddingBag(sum) with the LSTM input projection:
    #   sum_j emb[tok_j] @ W_ih^T  ==  counts @ (emb @ W_ih^T)
    w_eff = jnp.dot(params["embedding"], params["w_ih"].T)        # (V, 4H) f32
    b_gates = (params["b_ih"] + params["b_hh"]).reshape(1, -1)    # (1, 4H)

    # Token -> bag assignment and dense per-bag count matrix.  Counts are
    # small integers, so the bf16 cast below is exact.
    bag_ids = jnp.searchsorted(offsets, jnp.arange(T, dtype=offsets.dtype),
                               side="right") - 1
    counts = jnp.zeros((B, V), jnp.float32).at[bag_ids, text].add(1.0)
    # TODO(synk): for very large vocabularies replace the dense counts path
    # with a scalar-prefetch / DMA gather of W_eff rows (cost ~ T*4H not B*V).

    # ---- tiling: blocks divisible by (8, 128) or equal to (padded) dims ----
    tb = b_tile if B >= b_tile else _round_up(B, 8)
    tv = v_tile if V >= v_tile else _round_up(V, 128)
    Bp = _round_up(B, tb)
    Vp = _round_up(V, tv)

    counts_p = jnp.zeros((Bp, Vp), jnp.bfloat16)
    counts_p = counts_p.at[:B, :V].set(counts.astype(jnp.bfloat16))
    weff_p = jnp.zeros((Vp, 4 * H), jnp.bfloat16)
    weff_p = weff_p.at[:V, :].set(w_eff.astype(jnp.bfloat16))

    grid = (Bp // tb, Vp // tv)

    out = pl.pallas_call(
        functools.partial(_fused_kernel, H),
        out_shape=jax.ShapeDtypeStruct((Bp, 1), jnp.float32),
        grid_spec=pltpu.PrefetchScalarGridSpec(
            num_scalar_prefetch=0,
            grid=grid,
            in_specs=[
                pl.BlockSpec((tb, tv), lambda i, k: (i, k)),        # counts
                pl.BlockSpec((tv, 4 * H), lambda i, k: (k, 0)),     # W_eff
                pl.BlockSpec((1, 4 * H), lambda i, k: (0, 0)),      # gate bias
                pl.BlockSpec((1, H), lambda i, k: (0, 0)),          # fc weight
                pl.BlockSpec(memory_space=pltpu.MemorySpace.SMEM),  # fc bias
            ],
            out_specs=pl.BlockSpec((tb, 1), lambda i, k: (i, 0)),
            scratch_shapes=[pltpu.VMEM((tb, 4 * H), jnp.float32)],
        ),
        compiler_params=pltpu.CompilerParams(
            dimension_semantics=("parallel", "arbitrary"),
            vmem_limit_bytes=32 * 1024 * 1024,
        ),
    )(counts_p, weff_p, b_gates, params["w_fc"], params["b_fc"])

    return out[:B, 0]   # torch.reshape(outputs, (outputs.shape[0],))


def _reference_forward(text, offsets, params):
    """Pure-JAX f32 reference of the PyTorch forward pass."""
    B = offsets.shape[0]
    T = text.shape[0]
    H = params["w_fc"].shape[1]
    bag_ids = jnp.searchsorted(offsets, jnp.arange(T, dtype=offsets.dtype),
                               side="right") - 1
    embedded = jnp.zeros((B, params["embedding"].shape[1]), jnp.float32)
    embedded = embedded.at[bag_ids].add(params["embedding"][text])
    gates = embedded @ params["w_ih"].T + params["b_ih"] + params["b_hh"]
    i = jax.nn.sigmoid(gates[:, 0 * H:1 * H])
    g = jnp.tanh(gates[:, 2 * H:3 * H])
    o = jax.nn.sigmoid(gates[:, 3 * H:4 * H])
    h = o * jnp.tanh(i * g)
    return jax.nn.sigmoid(h @ params["w_fc"].T + params["b_fc"])[:, 0]


if __name__ == "__main__":
    vocab_size, embed_dim, hidden_dim, dropout = 64, 32, 32, 0.0
    # (dropout is a no-op for a 1-layer nn.LSTM, as in the reference module)

    key = jax.random.PRNGKey(0)
    pkey, tkey = jax.random.split(key)
    params = init_params(pkey, vocab_size, embed_dim, hidden_dim)

    num_bags, num_tokens = 8, 24
    text = jax.random.randint(tkey, (num_tokens,), 0, vocab_size,
                              dtype=jnp.int32)
    offsets = jnp.arange(0, num_tokens, num_tokens // num_bags,
                         dtype=jnp.int32)          # (8,) bag start offsets

    out = pytorch_network_forward(text, offsets, params, vocab_size)
    out = jax.block_until_ready(out)

    assert out.shape == (num_bags,) and out.dtype == jnp.float32
    assert bool(jnp.all((out >= 0.0) & (out <= 1.0)))
    ref = _reference_forward(text, offsets, params)
    assert bool(jnp.max(jnp.abs(out - ref)) < 5e-2)   # bf16 weight-table drift
    print("KERNEL_OK")
</pallas_src>

<mosaic_0001>
module attributes {stable_mosaic.version = 11 : i64} {
  func.func @_fused_kernel(%arg0: i32, %arg1: i32, %arg2: memref<8x128xbf16, #tpu.memory_space<vmem>>, %arg3: memref<128x128xbf16, #tpu.memory_space<vmem>>, %arg4: memref<1x128xf32, #tpu.memory_space<vmem>>, %arg5: memref<1x32xf32, #tpu.memory_space<vmem>>, %arg6: memref<1xf32, #tpu.memory_space<smem>>, %arg7: memref<8x1xf32, #tpu.memory_space<vmem>>, %arg8: memref<8x128xf32, #tpu.memory_space<vmem>>) attributes {dimension_semantics = [#tpu.dimension_semantics<parallel>, #tpu.dimension_semantics<arbitrary>], iteration_bounds = array<i64: 1, 1>, scalar_prefetch = 0 : i64, scratch_operands = 1 : i64, tpu.core_type = #tpu.core_type<tc>, window_params = [{transform_indices = @transform_0, window_bounds = array<i64: 8, 128>}, {transform_indices = @transform_1, window_bounds = array<i64: 128, 128>}, {pipeline_mode = #tpu.pipeline_mode<synchronous>, transform_indices = @transform_2, window_bounds = array<i64: 1, 128>}, {pipeline_mode = #tpu.pipeline_mode<synchronous>, transform_indices = @transform_3, window_bounds = array<i64: 1, 32>}, {transform_indices = @transform_4, window_bounds = array<i64: 1>}, {transform_indices = @transform_5, window_bounds = array<i64: 8, 1>}]} {
    %c0_i32 = arith.constant 0 : i32
    %0 = arith.cmpi eq, %arg1, %c0_i32 : i32
    %1 = arith.extui %0 : i1 to i32
    %c0_i32_0 = arith.constant 0 : i32
    %2 = arith.cmpi ne, %1, %c0_i32_0 : i32
    scf.if %2 {
      %cst_10 = arith.constant 0.000000e+00 : f32
      %12 = vector.broadcast %cst_10 : f32 to vector<8x128xf32>
      %c0_11 = arith.constant 0 : index
      %c0_12 = arith.constant 0 : index
      %13 = vector.load %arg8[%c0_11, %c0_12] : memref<8x128xf32, #tpu.memory_space<vmem>>, vector<8x128xf32>
      tpu.vector_store %arg8[%c0_11, %c0_12], %12 {strides = array<i32>} : memref<8x128xf32, #tpu.memory_space<vmem>>, vector<8x128xf32>,
    } else {
    }
    %c0 = arith.constant 0 : index
    %c0_1 = arith.constant 0 : index
    %3 = vector.load %arg8[%c0, %c0_1] : memref<8x128xf32, #tpu.memory_space<vmem>>, vector<8x128xf32>
    %c0_2 = arith.constant 0 : index
    %c0_3 = arith.constant 0 : index
    %4 = vector.load %arg2[%c0_2, %c0_3] : memref<8x128xbf16, #tpu.memory_space<vmem>>, vector<8x128xbf16>
    %c0_4 = arith.constant 0 : index
    %c0_5 = arith.constant 0 : index
    %5 = vector.load %arg3[%c0_4, %c0_5] : memref<128x128xbf16, #tpu.memory_space<vmem>>, vector<128x128xbf16>
    %cst = arith.constant dense<0.000000e+00> : vector<8x128xf32>
    %6 = tpu.matmul %4, %5, %cst {dimension_numbers = #tpu.dot_dimension_numbers<[1], [0], [0], [1], [0, 0, 1, 1], [], []>} : vector<8x128xbf16>, vector<128x128xbf16>, vector<8x128xf32> -> vector<8x128xf32>
    %7 = arith.addf %3, %6 : vector<8x128xf32>
    %c0_6 = arith.constant 0 : index
    %c0_7 = arith.constant 0 : index
    %8 = vector.load %arg8[%c0_6, %c0_7] : memref<8x128xf32, #tpu.memory_space<vmem>>, vector<8x128xf32>
    tpu.vector_store %arg8[%c0_6, %c0_7], %7 {strides = array<i32>} : memref<8x128xf32, #tpu.memory_space<vmem>>, vector<8x128xf32>,
    %c0_i32_8 = arith.constant 0 : i32
    %9 = arith.cmpi eq, %arg1, %c0_i32_8 : i32
    %10 = arith.extui %9 : i1 to i32
    %c0_i32_9 = arith.constant 0 : i32
    %11 = arith.cmpi ne, %10, %c0_i32_9 : i32
    scf.if %11 {
      %c0_10 = arith.constant 0 : index
      %c0_11 = arith.constant 0 : index
      %12 = vector.load %arg8[%c0_10, %c0_11] : memref<8x128xf32, #tpu.memory_space<vmem>>, vector<8x128xf32>
      %c0_12 = arith.constant 0 : index
      %c0_13 = arith.constant 0 : index
      %13 = vector.load %arg4[%c0_12, %c0_13] : memref<1x128xf32, #tpu.memory_space<vmem>>, vector<1x128xf32>
      %14 = vector.broadcast %13 : vector<1x128xf32> to vector<8x128xf32>
      %15 = arith.addf %12, %14 : vector<8x128xf32>
      %16 = vector.extract_strided_slice %15 {offsets = [0, 0], sizes = [8, 32], strides = [1, 1]} : vector<8x128xf32> to vector<8x32xf32>
      %17 = arith.negf %16 : vector<8x32xf32>
      %18 = math.exp %17 : vector<8x32xf32>
      %cst_14 = arith.constant 1.000000e+00 : f32
      %19 = vector.broadcast %cst_14 : f32 to vector<8x32xf32>
      %20 = arith.addf %19, %18 : vector<8x32xf32>
      %21 = arith.divf %19, %20 : vector<8x32xf32>
      %22 = vector.extract_strided_slice %15 {offsets = [0, 64], sizes = [8, 32], strides = [1, 1]} : vector<8x128xf32> to vector<8x32xf32>
      %23 = math.tanh %22 : vector<8x32xf32>
      %24 = vector.extract_strided_slice %15 {offsets = [0, 96], sizes = [8, 32], strides = [1, 1]} : vector<8x128xf32> to vector<8x32xf32>
      %25 = arith.negf %24 : vector<8x32xf32>
      %26 = math.exp %25 : vector<8x32xf32>
      %cst_15 = arith.constant 1.000000e+00 : f32
      %27 = vector.broadcast %cst_15 : f32 to vector<8x32xf32>
      %28 = arith.addf %27, %26 : vector<8x32xf32>
      %29 = arith.divf %27, %28 : vector<8x32xf32>
      %30 = arith.mulf %21, %23 : vector<8x32xf32>
      %31 = math.tanh %30 : vector<8x32xf32>
      %32 = arith.mulf %29, %31 : vector<8x32xf32>
      %c0_16 = arith.constant 0 : index
      %c0_17 = arith.constant 0 : index
      %33 = vector.load %arg5[%c0_16, %c0_17] : memref<1x32xf32, #tpu.memory_space<vmem>>, vector<1x32xf32>
      %34 = vector.broadcast %33 : vector<1x32xf32> to vector<8x32xf32>
      %35 = arith.mulf %32, %34 : vector<8x32xf32>
      %cst_18 = arith.constant dense<0.000000e+00> : vector<8xf32>
      %36 = vector.multi_reduction <add>, %35, %cst_18 [1] : vector<8x32xf32> to vector<8xf32>
      %37 = vector.shape_cast %36 : vector<8xf32> to vector<8x1xf32>
      %c0_19 = arith.constant 0 : index
      %38 = memref.load %arg6[%c0_19] : memref<1xf32, #tpu.memory_space<smem>>
      %39 = vector.broadcast %38 : f32 to vector<8x1xf32>
      %40 = arith.addf %37, %39 : vector<8x1xf32>
      %41 = arith.negf %40 : vector<8x1xf32>
      %42 = math.exp %41 : vector<8x1xf32>
      %cst_20 = arith.constant 1.000000e+00 : f32
      %43 = vector.broadcast %cst_20 : f32 to vector<8x1xf32>
      %44 = arith.addf %43, %42 : vector<8x1xf32>
      %45 = arith.divf %43, %44 : vector<8x1xf32>
      %c0_21 = arith.constant 0 : index
      %c0_22 = arith.constant 0 : index
      %46 = vector.load %arg7[%c0_21, %c0_22] : memref<8x1xf32, #tpu.memory_space<vmem>>, vector<8x1xf32>
      tpu.vector_store %arg7[%c0_21, %c0_22], %45 {strides = array<i32>} : memref<8x1xf32, #tpu.memory_space<vmem>>, vector<8x1xf32>,
    } else {
    }
    return
  }
  func.func @transform_0(%arg0: i32, %arg1: i32) -> (i32, i32) {
    %c0_i32 = arith.constant 0 : i32
    return %arg0, %arg1 : i32, i32
  }
  func.func @transform_1(%arg0: i32, %arg1: i32) -> (i32, i32) {
    %c0_i32 = arith.constant 0 : i32
    %c0_i32_0 = arith.constant 0 : i32
    return %arg1, %c0_i32 : i32, i32
  }
  func.func @transform_2(%arg0: i32, %arg1: i32) -> (i32, i32) {
    %c0_i32 = arith.constant 0 : i32
    %c0_i32_0 = arith.constant 0 : i32
    %c0_i32_1 = arith.constant 0 : i32
    return %c0_i32, %c0_i32_0 : i32, i32
  }
  func.func @transform_3(%arg0: i32, %arg1: i32) -> (i32, i32) {
    %c0_i32 = arith.constant 0 : i32
    %c0_i32_0 = arith.constant 0 : i32
    %c0_i32_1 = arith.constant 0 : i32
    return %c0_i32, %c0_i32_0 : i32, i32
  }
  func.func @transform_4(%arg0: i32, %arg1: i32) -> i32 {
    %c0_i32 = arith.constant 0 : i32
    %c0_i32_0 = arith.constant 0 : i32
    return %c0_i32 : i32
  }
  func.func @transform_5(%arg0: i32, %arg1: i32) -> (i32, i32) {
    %c0_i32 = arith.constant 0 : i32
    %c0_i32_0 = arith.constant 0 : i32
    return %arg0, %c0_i32 : i32, i32
  }
}

</mosaic_0001>

<llo_original>
// kernel: tpu_custom_call.1
$region0: #{tpu_custom_call.1}
  #allocation0 [shape = 'u32[]', space=smem, size = 0x4, offset = 0x4, fixed_abs, tag = 'smem constant byte address 0x4 - core index']
  #allocation1 [shape = 'u32[72,128]{1,0:T(1,128)}', space=vmem, size = 0x9000, scoped, tag = 'internal scratch']
  #allocation2 [shape = 'f32[8,128]{1,0:T(8,128)}', space=vmem, size = 0x1000, scoped, tag = 'scratch operand']
  #allocation3 [shape = 'f32[1]{0:T(128)S(6)}', space=smem, size = 0x200, scoped, tag = 'scoped memory for tpu_custom_call.1']
  %s0 = inlined_call_operand.hbm [shape: bf16[8,128], index: 0, kind: input, shape index: {}]
  %s1 = inlined_call_operand.hbm [shape: bf16[128,128], index: 1, kind: input, shape index: {}]
  %s2 = inlined_call_operand.vmem [shape: f32[1,128], index: 2, kind: input, shape index: {}]
  %s3 = inlined_call_operand.vmem [shape: f32[1,32], index: 3, kind: input, shape index: {}]
  %s4 = inlined_call_operand.<no memory space> [shape: f32[1], index: 4, kind: input, shape index: {}]
  %s5 = inlined_call_operand.vmem [shape: f32[8,1], index: 5, kind: output, shape index: {}]
  %s6 = sld [smem:[#allocation0]]
  $region46: #{tpu_custom_call.1} parent=0
    _
  %s8 = ssub.s32 1, %s6
  %s9 = scalar_select 0, %s8, %s6
  %10 = sst [smem:[#allocation3]] %s4
  $region1: #{tpu_custom_call.1} parent=0
    #allocation4 [shape = 'u8[2048]{0}', space=vmem, size = 0x800, scoped, tag = 'input window, operand 0, single buffered']
    #allocation5 [shape = 's32[1]{0}', space=sflag, size = 0x4, scoped, tag = 'scoped memory for tpu_custom_call.1']
    #allocation6 [shape = 'u8[32768]{0}', space=vmem, size = 0x8000, scoped, tag = 'input window, operand 1, single buffered']
    #allocation7 [shape = 's32[1]{0}', space=sflag, size = 0x4, scoped, tag = 'scoped memory for tpu_custom_call.1']
    %11 = vsyncpa [#allocation5], 0
    %12 = vsyncpa [#allocation7], 0
    // Predicated region
    $region2: #{tpu_custom_call.1} parent=1 // pred_check
      _
    $region3: #{tpu_custom_call.1} parent=1 // pred_check_branch
      %14 = sbr.rel (0) target = $region5
    $region4: #{tpu_custom_call.1} parent=1 // pred_region
      %16 = vsyncadd [#allocation5], 0
      %s18 = sshll.u32 %s0, 4
      %s19 = int_to_ptr.hbm [resolvable:$true] %s18
      %s20 = sshll.u32 [#allocation4], 4
      %s21 = int_to_ptr.vmem [resolvable:$true] %s20
      %23 = dma.hbm_to_vmem [thread:$0]  %s19, 64, %s21, [#allocation5]
    $region5: #{tpu_custom_call.1} parent=1 // pred_fallthru
      _
    // Predicated region
    $region6: #{tpu_custom_call.1} parent=1 // pred_check
      _
    $region7: #{tpu_custom_call.1} parent=1 // pred_check_branch
      %25 = sbr.rel (0) target = $region9
    $region8: #{tpu_custom_call.1} parent=1 // pred_region
      %27 = vsyncadd [#allocation7], 0
      %s28 = sshll.u32 %s1, 4
      %s29 = int_to_ptr.hbm [resolvable:$true] %s28
      %s30 = sshll.u32 [#allocation6], 4
      %s31 = int_to_ptr.vmem [resolvable:$true] %s30
      %36 = dma.hbm_to_vmem [thread:$0]  %s29, 1024, %s31, [#allocation7], 64, 64, 4
    $region9: #{tpu_custom_call.1} parent=1 // pred_fallthru
      _
    // Predicated region
    $region10: #{tpu_custom_call.1} parent=1 // pred_check
      _
    $region11: #{tpu_custom_call.1} parent=1 // pred_check_branch
      %38 = sbr.rel (0) target = $region13
    $region12: #{tpu_custom_call.1} parent=1 // pred_region
      _
    $region13: #{tpu_custom_call.1} parent=1 // pred_fallthru
      _
    // Predicated region
    $region14: #{tpu_custom_call.1} parent=1 // pred_check
      _
    $region15: #{tpu_custom_call.1} parent=1 // pred_check_branch
      %40 = sbr.rel (0) target = $region17
    $region16: #{tpu_custom_call.1} parent=1 // pred_region
      _
    $region17: #{tpu_custom_call.1} parent=1 // pred_fallthru
      _
    // Predicated region
    $region18: #{tpu_custom_call.1} parent=1 // pred_check
      _
    $region19: #{tpu_custom_call.1} parent=1 // pred_check_branch
      %42 = sbr.rel (0) target = $region21
    $region20: #{tpu_custom_call.1} parent=1 // pred_region
      _
    $region21: #{tpu_custom_call.1} parent=1 // pred_fallthru
      _
    // Predicated region
    $region22: #{tpu_custom_call.1} parent=1 // pred_check
      _
    $region23: #{tpu_custom_call.1} parent=1 // pred_check_branch
      %44 = sbr.rel (0) target = $region25
    $region24: #{tpu_custom_call.1} parent=1 // pred_region
      %46 = dma.done [#allocation5], 64
    $region25: #{tpu_custom_call.1} parent=1 // pred_fallthru
      _
    // Predicated region
    $region26: #{tpu_custom_call.1} parent=1 // pred_check
      _
    $region27: #{tpu_custom_call.1} parent=1 // pred_check_branch
      %48 = sbr.rel (0) target = $region29
    $region28: #{tpu_custom_call.1} parent=1 // pred_region
      %50 = dma.done [#allocation7], 1024
    $region29: #{tpu_custom_call.1} parent=1 // pred_fallthru
      _
    %p51 = scmp.eq.s32.totalorder 0, 0
    // Predicated region
    $region30: #{tpu_custom_call.1} parent=1 // pred_check
      %p52 = pneg %p51
    $region31: #{tpu_custom_call.1} parent=1 // pred_check_branch
      %54 = sbr.rel (%p52) target = $region33
    $region32: #{tpu_custom_call.1} parent=1 // pred_region
      %55 = vst [vmem:[#allocation2] sm:$0xff] 0.0
    $region33: #{tpu_custom_call.1} parent=1 // pred_fallthru
      _
    %v56 = vld [vmem:[#allocation2] sm:$0xff]
    %v57 = vld [vmem:[#allocation4] sm:$0xf]
    %v58 = vld [vmem:[#allocation6] sm:$0xf]
    %v59 = vld [vmem:[#allocation6 + $0x4] sm:$0xf]
    %v60 = vld [vmem:[#allocation6 + $0x8] sm:$0xf]
    %v61 = vld [vmem:[#allocation6 + $0xc] sm:$0xf]
    %v62 = vld [vmem:[#allocation6 + $0x10] sm:$0xf]
    %v63 = vld [vmem:[#allocation6 + $0x14] sm:$0xf]
    %v64 = vld [vmem:[#allocation6 + $0x18] sm:$0xf]
    %v65 = vld [vmem:[#allocation6 + $0x1c] sm:$0xf]
    %v66 = vld [vmem:[#allocation6 + $0x20] sm:$0xf]
    %v67 = vld [vmem:[#allocation6 + $0x24] sm:$0xf]
    %v68 = vld [vmem:[#allocation6 + $0x28] sm:$0xf]
    %v69 = vld [vmem:[#allocation6 + $0x2c] sm:$0xf]
    %v70 = vld [vmem:[#allocation6 + $0x30] sm:$0xf]
    %v71 = vld [vmem:[#allocation6 + $0x34] sm:$0xf]
    %v72 = vld [vmem:[#allocation6 + $0x38] sm:$0xf]
    %v73 = vld [vmem:[#allocation6 + $0x3c] sm:$0xf]
    %v90 = vunpack.c.l.b16 %v58
    %v91 = vunpack.c.l.b16 %v59
    %v92 = vunpack.c.l.b16 %v60
    %v93 = vunpack.c.l.b16 %v61
    %v94 = vunpack.c.l.b16 %v62
    %v95 = vunpack.c.l.b16 %v63
    %v96 = vunpack.c.l.b16 %v64
    %v97 = vunpack.c.l.b16 %v65
    %v98 = vunpack.c.l.b16 %v66
    %v99 = vunpack.c.l.b16 %v67
    %v100 = vunpack.c.l.b16 %v68
    %v101 = vunpack.c.l.b16 %v69
    %v102 = vunpack.c.l.b16 %v70
    %v103 = vunpack.c.l.b16 %v71
    %v104 = vunpack.c.l.b16 %v72
    %v105 = vunpack.c.l.b16 %v73
    %v106 = vpack.c.b16 %v91, %v90
    %v107 = vpack.c.b16 %v93, %v92
    %v108 = vpack.c.b16 %v95, %v94
    %v109 = vpack.c.b16 %v97, %v96
    %v110 = vpack.c.b16 %v99, %v98
    %v111 = vpack.c.b16 %v101, %v100
    %v112 = vpack.c.b16 %v103, %v102
    %v113 = vpack.c.b16 %v105, %v104
    %122 = vmatpush.bf16.msra.mxu0 %v113
    %123 = vmatpush.bf16.msra.mxu0 %v112
    %124 = vmatpush.bf16.msra.mxu0 %v111
    %125 = vmatpush.bf16.msra.mxu0 %v110
    %126 = vmatpush.bf16.msra.mxu0 %v109
    %127 = vmatpush.bf16.msra.mxu0 %v108
    %128 = vmatpush.bf16.msra.mxu0 %v107
    %129 = vmatpush.bf16.msra.mxu0 %v106
    %130 = vmatmul.bf16.gmra.mxu0 %v57
    %v131 = vpop.f32.mrf.mxu0
    %v132 = vadd.f32 0.0, %v131
    %v133 = vpop.f32.mrf.mxu0
    %134 = vdwg.mxu0
    %v135 = vadd.f32 %v56, %v132
    %136 = vst [vmem:[#allocation2] sm:$0xff] %v135
    // Predicated region
    $region34: #{tpu_custom_call.1} parent=1 // pred_check
      %p137 = pneg %p51
    $region35: #{tpu_custom_call.1} parent=1 // pred_check_branch
      %139 = sbr.rel (%p137) target = $region37
    $region36: #{tpu_custom_call.1} parent=1 // pred_region
      %v140 = vld [vmem:[#allocation2] sm:$0xff]
      %v141 = vld [vmem:[%s2] sm:$0x1]
      %v143 = vperm.slane %v141, 0
      %v145 = vadd.f32 %v140, %v143
      %v146 = vxor.u32 %v145, 2147483648
      %v147 = vmul.f32 %v146, 1.442695
      %v148 = vpow.pop %v147
      %v149 = vadd.f32 %v148, 1.0
      %v150 = vrcp.pop %v149
      %v151 = vmul.f32 %v149, %v150
      %v152 = vsub.f32 1.0, %v151
      %v153 = vmul.f32 %v150, %v152
      %v154 = vadd.f32 %v150, %v153
      %vm155 = vweird.f32 %v149
      %vm156 = vweird.f32 %v150
      %vm157 = vmor %vm155, %vm156
      %v158 = vsel %vm157, %v150, %v154
      %v159 = vand.u32 2147483647, %v149
      %vm160 = vcmp.eq.f32.partialorder %v159, 8.507059e+37
      %v161 = vand.u32 %v149, 2147483648
      %v162 = vor.u32 1.1754944e-38, %v161
      %v163 = vsel %vm160, %v162, %v158
      %v164 = vmul.f32 1.0, %v163
      %v165 = vtanh.pop %v145
      %167 = vrot.lane.b32.xlu0 %v165, 64
      %v168 = vpop.permute.xlu0 %167
      %v170 = vmul.f32 %v164, %v168
      %v171 = vtanh.pop %v170
      %173 = vrot.lane.b32.xlu0 %v171, 96
      %v174 = vpop.permute.xlu0 %173
      %v176 = vmul.f32 %v164, %v174
      %v177 = vld [vmem:[%s3] sm:$0x1]
      %v179 = vperm.slane %v177, 0
      %180 = vrot.lane.b32.xlu0 %v179, 96
      %v181 = vpop.permute.xlu0 %180
      %v183 = vmul.f32 %v176, %v181
      %185 = vrot.lane.b32.xlu0 %v183, 32
      %v186 = vpop.permute.xlu0 %185
      %vm188 = vcmask 261120
      %v189 = vsel %vm188, %v186, 0.0
      %190 = vadd.xlane.f32.xlu0 %v189
      %v191 = vpop.xlane.xlu0 %190
      %s192 = sld [smem:[#allocation3]]
      %v193 = vstv %s192
      %v194 = vadd.f32 %v191, %v193
      %v195 = vxor.u32 %v194, 2147483648
      %v196 = vmul.f32 %v195, 1.442695
      %v197 = vpow.pop %v196
      %v198 = vadd.f32 %v197, 1.0
      %v199 = vrcp.pop %v198
      %v200 = vmul.f32 %v198, %v199
      %v201 = vsub.f32 1.0, %v200
      %v202 = vmul.f32 %v199, %v201
      %v203 = vadd.f32 %v199, %v202
      %vm204 = vweird.f32 %v198
      %vm205 = vweird.f32 %v199
      %vm206 = vmor %vm204, %vm205
      %v207 = vsel %vm206, %v199, %v203
      %v208 = vand.u32 2147483647, %v198
      %vm209 = vcmp.eq.f32.partialorder %v208, 8.507059e+37
      %v210 = vand.u32 %v198, 2147483648
      %v211 = vor.u32 1.1754944e-38, %v210
      %v212 = vsel %vm209, %v211, %v207
      %v213 = vmul.f32 1.0, %v212
      %vm214 = vcmask 7168
      %215 = vst.msk [vmem:[%s5] sm:$0xff] %vm214, %v213
    $region37: #{tpu_custom_call.1} parent=1 // pred_fallthru
      _
    // Predicated region
    $region38: #{tpu_custom_call.1} parent=1 // pred_check
      _
    $region39: #{tpu_custom_call.1} parent=1 // pred_check_branch
      %217 = sbr.rel (0) target = $region41
    $region40: #{tpu_custom_call.1} parent=1 // pred_region
      _
    $region41: #{tpu_custom_call.1} parent=1 // pred_fallthru
      _
    // Predicated region
    $region42: #{tpu_custom_call.1} parent=1 // pred_check
      _
    $region43: #{tpu_custom_call.1} parent=1 // pred_check_branch
      %219 = sbr.rel (0) target = $region45
    $region44: #{tpu_custom_call.1} parent=1 // pred_region
      _
    $region45: #{tpu_custom_call.1} parent=1 // pred_fallthru
      _
    %220 = vsyncpa [#allocation5], 1
    %221 = vsyncpa [#allocation7], 1

</llo_original>
